<compile_context>
chip_gen: v7x
topology: tpu7x:2x2x1
jax: 0.10.0
libtpu: 0.0.40
codegen_flags: <defaults>
</compile_context>

<pallas_src>
import functools

import jax
import jax.numpy as jnp
from jax.experimental import pallas as pl
from jax.experimental.pallas import tpu as pltpu

_LANE = 128


def _round_up(x, m):
    return ((x + m - 1) // m) * m


def cnp_kernel(obs_ref, tgt_ref, w_in_ref, w_hh_ref, b_ref, out_ref, *,
               bblk, n_ctx_p, n_ctx, n_tgt_p, hp, dp, d_y, min_std):
    HP = hp
    DP = dp

    obs = obs_ref[...]                        # (bblk*n_ctx_p, DP)
    tgt = tgt_ref[...]                        # (bblk*n_tgt_p, DP)

    # ---- unpack packed parameters (static, sublane-aligned slices) ----
    ew0 = w_in_ref[0:DP, :]                   # encoder layer-0 weight (padded)
    qw0x = w_in_ref[DP:2 * DP, :]             # decoder layer-0 "x" half (padded)
    ew1 = w_hh_ref[0 * HP:1 * HP, :]
    ew2 = w_hh_ref[1 * HP:2 * HP, :]
    qw0r = w_hh_ref[2 * HP:3 * HP, :]         # decoder layer-0 "r" half
    qw1 = w_hh_ref[3 * HP:4 * HP, :]
    qw2 = w_hh_ref[4 * HP:5 * HP, :]          # fused [mean|logstd] head, padded to HP cols
    b = b_ref[...]                            # (8, HP) packed biases
    eb0, eb1, eb2 = b[0:1, :], b[1:2, :], b[2:3, :]
    qb0, qb1, qb2 = b[3:4, :], b[4:5, :], b[5:6, :]

    # ---- encoder MLP on all flattened context rows of the batch block ----
    h = jnp.maximum(jnp.dot(obs, ew0, preferred_element_type=jnp.float32) + eb0, 0.0)
    h = jnp.maximum(jnp.dot(h, ew1, preferred_element_type=jnp.float32) + eb1, 0.0)
    h = jnp.dot(h, ew2, preferred_element_type=jnp.float32) + eb2   # (bblk*n_ctx_p, HP)

    # ---- aggregate: per-batch-element mean over its *true* n_ctx rows ----
    h3 = h.reshape(bblk, n_ctx_p, HP)
    if n_ctx_p != n_ctx:
        ctx_idx = jax.lax.broadcasted_iota(jnp.int32, (bblk, n_ctx_p, HP), 1)
        h3 = jnp.where(ctx_idx < n_ctx, h3, 0.0)
    r = jnp.sum(h3, axis=1) * (1.0 / n_ctx)                          # (bblk, HP)

    # ---- decoder layer 0: concat(r, x) @ W0 == r @ W0[:H] + x @ W0[H:] ----
    r_part = jnp.dot(r, qw0r, preferred_element_type=jnp.float32) + qb0   # (bblk, HP)
    x_part = jnp.dot(tgt, qw0x, preferred_element_type=jnp.float32)       # (bblk*n_tgt_p, HP)
    q = x_part.reshape(bblk, n_tgt_p, HP) + r_part[:, None, :]            # broadcast add
    q = jnp.maximum(q, 0.0).reshape(bblk * n_tgt_p, HP)
    q = jnp.maximum(jnp.dot(q, qw1, preferred_element_type=jnp.float32) + qb1, 0.0)

    # ---- fused head: cols [0,d_y)=mean, [d_y,2*d_y)=logstd, rest padding ----
    head = jnp.dot(q, qw2, preferred_element_type=jnp.float32) + qb2      # (bblk*n_tgt_p, HP)
    # numerically-stable softplus (matches torch.nn.functional.softplus) + min_std
    sp = jnp.log1p(jnp.exp(-jnp.abs(head))) + jnp.maximum(head, 0.0) + min_std
    lane = jax.lax.broadcasted_iota(jnp.int32, head.shape, 1)
    is_std = (lane >= d_y) & (lane < 2 * d_y)
    out_ref[...] = jnp.where(is_std, sp, head)


def cnp_forward(observation, target, params, min_std=0.1, observation_mask=None,
                target_rows=1024, vmem_budget_bytes=24 * 1024 * 1024):
    # TODO(synk): observation_mask (masked-mean) not implemented in the kernel.
    assert observation_mask is None, "masked aggregation not implemented"

    B, n_ctx, d_obs = observation.shape
    _, n_tgt, d_x = target.shape
    d_y = d_obs - d_x
    H = params["ew1"].shape[0]

    HP = _round_up(H, _LANE)                  # hidden padded to lane width (128)
    DP = _round_up(max(d_obs, d_x), 8)        # padded input feature width
    n_ctx_p = _round_up(n_ctx, 8)
    n_tgt_p = _round_up(n_tgt, 8)
    assert 2 * d_y <= HP

    # ---- pack parameters into 3 arrays (fewer, larger DMAs), padded to HP ----
    def pad2(a, rows, cols):
        return jnp.pad(a, ((0, rows - a.shape[0]), (0, cols - a.shape[1])))

    w_in = jnp.concatenate([pad2(params["ew0"], DP, HP),
                            pad2(params["qw0x"], DP, HP)], axis=0)      # (2*DP, HP)
    qw2 = jnp.concatenate([params["qw2m"], params["qw2s"]], axis=1)     # (H, 2*d_y)
    w_hh = jnp.concatenate([pad2(params["ew1"], HP, HP),
                            pad2(params["ew2"], HP, HP),
                            pad2(params["qw0r"], HP, HP),
                            pad2(params["qw1"], HP, HP),
                            pad2(qw2, HP, HP)], axis=0)                 # (5*HP, HP)
    qb2 = jnp.concatenate([params["qb2m"], params["qb2s"]], axis=1)     # (1, 2*d_y)
    b_all = jnp.concatenate([pad2(params["eb0"], 1, HP),
                             pad2(params["eb1"], 1, HP),
                             pad2(params["eb2"], 1, HP),
                             pad2(params["qb0"], 1, HP),
                             pad2(params["qb1"], 1, HP),
                             pad2(qb2, 1, HP),
                             jnp.zeros((2, HP), jnp.float32)], axis=0)  # (8, HP)

    # ---- choose bblk from a VMEM budget, targeting ~target_rows-row blocks ----
    def est_vmem(bb):
        ctx_rows = bb * n_ctx_p
        tgt_rows = bb * n_tgt_p
        in_b = 2 * (ctx_rows + tgt_rows) * _LANE * 4      # lane-padded, double-buffered inputs
        out_b = 2 * tgt_rows * HP * 4                     # double-buffered output
        act_b = (3 * ctx_rows + 4 * tgt_rows) * HP * 4    # rough live-activation bound
        w_b = 2 * (2 * DP + 5 * HP + 8) * HP * 4
        return in_b + out_b + act_b + w_b

    rows_unit = max(n_ctx_p, n_tgt_p)
    bblk = max(1, target_rows // rows_unit)
    while bblk > 1 and est_vmem(bblk) > vmem_budget_bytes:
        bblk = (bblk + 1) // 2
    if B >= 2:
        # keep >=2 grid steps so the "parallel" axis can shard across v7x's 2 TCs
        bblk = min(bblk, (B + 1) // 2)
    bblk = max(bblk, 1)
    B_pad = _round_up(B, bblk)
    grid = (B_pad // bblk,)

    # ---- pad data (batch, points, features) and flatten to rows ----
    obs_flat = jnp.pad(observation,
                       ((0, B_pad - B), (0, n_ctx_p - n_ctx), (0, DP - d_obs))
                       ).reshape(B_pad * n_ctx_p, DP)
    tgt_flat = jnp.pad(target,
                       ((0, B_pad - B), (0, n_tgt_p - n_tgt), (0, DP - d_x))
                       ).reshape(B_pad * n_tgt_p, DP)

    kernel = functools.partial(
        cnp_kernel, bblk=bblk, n_ctx_p=n_ctx_p, n_ctx=n_ctx, n_tgt_p=n_tgt_p,
        hp=HP, dp=DP, d_y=d_y, min_std=min_std)

    rows_c = B_pad * n_ctx_p
    rows_t = B_pad * n_tgt_p
    flops = (2 * rows_c * (DP * HP + 2 * HP * HP)
             + 2 * rows_t * (DP * HP + 2 * HP * HP)
             + 2 * B_pad * HP * HP)
    bytes_accessed = (obs_flat.size + tgt_flat.size + w_in.size + w_hh.size
                      + b_all.size + rows_t * HP) * 4
    cost = pl.CostEstimate(flops=int(flops),
                           transcendentals=int(2 * rows_t * HP),
                           bytes_accessed=int(bytes_accessed))

    out = pl.pallas_call(
        kernel,
        out_shape=jax.ShapeDtypeStruct((B_pad * n_tgt_p, HP), jnp.float32),
        grid=grid,
        in_specs=[
            pl.BlockSpec((bblk * n_ctx_p, DP), lambda i: (i, 0)),
            pl.BlockSpec((bblk * n_tgt_p, DP), lambda i: (i, 0)),
            pl.BlockSpec(w_in.shape, lambda i: (0, 0)),
            pl.BlockSpec(w_hh.shape, lambda i: (0, 0)),
            pl.BlockSpec(b_all.shape, lambda i: (0, 0)),
        ],
        out_specs=pl.BlockSpec((bblk * n_tgt_p, HP), lambda i: (i, 0)),
        compiler_params=pltpu.CompilerParams(
            dimension_semantics=("parallel",),
            vmem_limit_bytes=48 * 1024 * 1024),
        cost_estimate=cost,
    )(obs_flat, tgt_flat, w_in, w_hh, b_all)

    out = out.reshape(B_pad, n_tgt_p, HP)
    mean = out[:B, :n_tgt, :d_y]
    std = out[:B, :n_tgt, d_y:2 * d_y]
    return mean, std


def cnp_reference(observation, target, params, min_std=0.1):
    # pure-JAX reference mirroring the PyTorch module's forward()
    h = jnp.maximum(observation @ params["ew0"] + params["eb0"], 0.0)
    h = jnp.maximum(h @ params["ew1"] + params["eb1"], 0.0)
    h = h @ params["ew2"] + params["eb2"]
    r = h.mean(axis=1, keepdims=True)                              # (B, 1, H)
    n_tgt = target.shape[1]
    r = jnp.broadcast_to(r, (r.shape[0], n_tgt, r.shape[2]))
    h_cat = jnp.concatenate([r, target], axis=-1)
    qw0 = jnp.concatenate([params["qw0r"], params["qw0x"]], axis=0)
    q = jnp.maximum(h_cat @ qw0 + params["qb0"], 0.0)
    q = jnp.maximum(q @ params["qw1"] + params["qb1"], 0.0)
    mean = q @ params["qw2m"] + params["qb2m"]
    logstd = q @ params["qw2s"] + params["qb2s"]
    std = jax.nn.softplus(logstd) + min_std
    return mean, std


def init_params(key, d_x, d_y, hidden):
    def dense(k, shape):
        return jax.random.normal(k, shape, jnp.float32) * 0.1

    ks = jax.random.split(key, 15)
    p = {}
    # encoder: Linear(d_x+d_y, H) / Linear(H, H) / Linear(H, H)
    p["ew0"] = dense(ks[0], (d_x + d_y, hidden)); p["eb0"] = dense(ks[1], (1, hidden))
    p["ew1"] = dense(ks[2], (hidden, hidden));    p["eb1"] = dense(ks[3], (1, hidden))
    p["ew2"] = dense(ks[4], (hidden, hidden));    p["eb2"] = dense(ks[5], (1, hidden))
    # query: Linear(H+d_x, H) split into [r | x] halves / Linear(H, H) / Linear(H, 2*d_y)
    p["qw0r"] = dense(ks[6], (hidden, hidden))
    p["qw0x"] = dense(ks[7], (d_x, hidden))
    p["qb0"] = dense(ks[8], (1, hidden))
    p["qw1"] = dense(ks[9], (hidden, hidden));    p["qb1"] = dense(ks[10], (1, hidden))
    p["qw2m"] = dense(ks[11], (hidden, d_y));     p["qb2m"] = dense(ks[12], (1, d_y))
    p["qw2s"] = dense(ks[13], (hidden, d_y));     p["qb2s"] = dense(ks[14], (1, d_y))
    return p


def _check(observation, target, params, min_std=0.1):
    mean, std = cnp_forward(observation, target, params, min_std=min_std)
    jax.block_until_ready((mean, std))
    ref_mean, ref_std = cnp_reference(observation, target, params, min_std=min_std)
    B, n_tgt, _ = target.shape
    d_y = observation.shape[-1] - target.shape[-1]
    assert mean.shape == (B, n_tgt, d_y) and std.shape == (B, n_tgt, d_y)
    assert jnp.allclose(mean, ref_mean, atol=1e-4, rtol=1e-4), "mean mismatch"
    assert jnp.allclose(std, ref_std, atol=1e-4, rtol=1e-4), "std mismatch"


if __name__ == "__main__":
    # CNP(in_shape=(d_x, d_y), hidden_size=32, num_hidden_layers=2)
    d_x, d_y, hidden = 4, 2, 32
    key = jax.random.PRNGKey(0)
    kp, ko, kt, ko2, kt2 = jax.random.split(key, 5)
    params = init_params(kp, d_x, d_y, hidden)

    # aligned shapes
    B, n_ctx, n_tgt = 2, 8, 8
    observation = jax.random.normal(ko, (B, n_ctx, d_x + d_y), jnp.float32)
    target = jax.random.normal(kt, (B, n_tgt, d_x), jnp.float32)
    _check(observation, target, params, min_std=0.1)

    # unaligned shapes (exercises n_ctx/n_tgt/B padding + masked-sum aggregation)
    B2, n_ctx2, n_tgt2 = 3, 10, 12
    observation2 = jax.random.normal(ko2, (B2, n_ctx2, d_x + d_y), jnp.float32)
    target2 = jax.random.normal(kt2, (B2, n_tgt2, d_x), jnp.float32)
    _check(observation2, target2, params, min_std=0.1)

    print("KERNEL_OK")
</pallas_src>

<mosaic_0001>
module attributes {stable_mosaic.version = 11 : i64} {
  func.func @cnp_kernel(%arg0: i32, %arg1: memref<8x8xf32, #tpu.memory_space<vmem>>, %arg2: memref<8x8xf32, #tpu.memory_space<vmem>>, %arg3: memref<16x128xf32, #tpu.memory_space<vmem>>, %arg4: memref<640x128xf32, #tpu.memory_space<vmem>>, %arg5: memref<8x128xf32, #tpu.memory_space<vmem>>, %arg6: memref<8x128xf32, #tpu.memory_space<vmem>>) attributes {dimension_semantics = [#tpu.dimension_semantics<parallel>], iteration_bounds = array<i64: 2>, scalar_prefetch = 0 : i64, scratch_operands = 0 : i64, tpu.core_type = #tpu.core_type<tc>, window_params = [{transform_indices = @transform_0, window_bounds = array<i64: 8, 8>}, {transform_indices = @transform_1, window_bounds = array<i64: 8, 8>}, {pipeline_mode = #tpu.pipeline_mode<synchronous>, transform_indices = @transform_2, window_bounds = array<i64: 16, 128>}, {pipeline_mode = #tpu.pipeline_mode<synchronous>, transform_indices = @transform_3, window_bounds = array<i64: 640, 128>}, {pipeline_mode = #tpu.pipeline_mode<synchronous>, transform_indices = @transform_4, window_bounds = array<i64: 8, 128>}, {transform_indices = @transform_5, window_bounds = array<i64: 8, 128>}]} {
    %c0 = arith.constant 0 : index
    %c0_0 = arith.constant 0 : index
    %0 = vector.load %arg1[%c0, %c0_0] : memref<8x8xf32, #tpu.memory_space<vmem>>, vector<8x8xf32>
    %c0_1 = arith.constant 0 : index
    %c0_2 = arith.constant 0 : index
    %1 = vector.load %arg2[%c0_1, %c0_2] : memref<8x8xf32, #tpu.memory_space<vmem>>, vector<8x8xf32>
    %c0_3 = arith.constant 0 : index
    %c0_4 = arith.constant 0 : index
    %2 = vector.load %arg3[%c0_3, %c0_4] : memref<16x128xf32, #tpu.memory_space<vmem>>, vector<8x128xf32>
    %c8 = arith.constant 8 : index
    %c0_5 = arith.constant 0 : index
    %3 = vector.load %arg3[%c8, %c0_5] : memref<16x128xf32, #tpu.memory_space<vmem>>, vector<8x128xf32>
    %c0_6 = arith.constant 0 : index
    %c0_7 = arith.constant 0 : index
    %4 = vector.load %arg4[%c0_6, %c0_7] : memref<640x128xf32, #tpu.memory_space<vmem>>, vector<128x128xf32>
    %c128 = arith.constant 128 : index
    %c0_8 = arith.constant 0 : index
    %5 = vector.load %arg4[%c128, %c0_8] : memref<640x128xf32, #tpu.memory_space<vmem>>, vector<128x128xf32>
    %c256 = arith.constant 256 : index
    %c0_9 = arith.constant 0 : index
    %6 = vector.load %arg4[%c256, %c0_9] : memref<640x128xf32, #tpu.memory_space<vmem>>, vector<128x128xf32>
    %c384 = arith.constant 384 : index
    %c0_10 = arith.constant 0 : index
    %7 = vector.load %arg4[%c384, %c0_10] : memref<640x128xf32, #tpu.memory_space<vmem>>, vector<128x128xf32>
    %c512 = arith.constant 512 : index
    %c0_11 = arith.constant 0 : index
    %8 = vector.load %arg4[%c512, %c0_11] : memref<640x128xf32, #tpu.memory_space<vmem>>, vector<128x128xf32>
    %c0_12 = arith.constant 0 : index
    %c0_13 = arith.constant 0 : index
    %9 = vector.load %arg5[%c0_12, %c0_13] : memref<8x128xf32, #tpu.memory_space<vmem>>, vector<8x128xf32>
    %10 = vector.extract_strided_slice %9 {offsets = [0, 0], sizes = [1, 128], strides = [1, 1]} : vector<8x128xf32> to vector<1x128xf32>
    %11 = vector.extract_strided_slice %9 {offsets = [1, 0], sizes = [1, 128], strides = [1, 1]} : vector<8x128xf32> to vector<1x128xf32>
    %12 = vector.extract_strided_slice %9 {offsets = [2, 0], sizes = [1, 128], strides = [1, 1]} : vector<8x128xf32> to vector<1x128xf32>
    %13 = vector.extract_strided_slice %9 {offsets = [3, 0], sizes = [1, 128], strides = [1, 1]} : vector<8x128xf32> to vector<1x128xf32>
    %14 = vector.extract_strided_slice %9 {offsets = [4, 0], sizes = [1, 128], strides = [1, 1]} : vector<8x128xf32> to vector<1x128xf32>
    %15 = vector.extract_strided_slice %9 {offsets = [5, 0], sizes = [1, 128], strides = [1, 1]} : vector<8x128xf32> to vector<1x128xf32>
    %cst = arith.constant dense<0.000000e+00> : vector<8x128xf32>
    %16 = tpu.matmul %0, %2, %cst {dimension_numbers = #tpu.dot_dimension_numbers<[1], [0], [0], [1], [0, 0, 1, 1], [], []>} : vector<8x8xf32>, vector<8x128xf32>, vector<8x128xf32> -> vector<8x128xf32>
    %17 = vector.broadcast %10 : vector<1x128xf32> to vector<8x128xf32>
    %18 = arith.addf %16, %17 : vector<8x128xf32>
    %cst_14 = arith.constant 0.000000e+00 : f32
    %19 = vector.broadcast %cst_14 : f32 to vector<8x128xf32>
    %20 = arith.maximumf %18, %19 : vector<8x128xf32>
    %cst_15 = arith.constant dense<0.000000e+00> : vector<8x128xf32>
    %21 = tpu.matmul %20, %4, %cst_15 {dimension_numbers = #tpu.dot_dimension_numbers<[1], [0], [0], [1], [0, 0, 1, 1], [], []>} : vector<8x128xf32>, vector<128x128xf32>, vector<8x128xf32> -> vector<8x128xf32>
    %22 = vector.broadcast %11 : vector<1x128xf32> to vector<8x128xf32>
    %23 = arith.addf %21, %22 : vector<8x128xf32>
    %cst_16 = arith.constant 0.000000e+00 : f32
    %24 = vector.broadcast %cst_16 : f32 to vector<8x128xf32>
    %25 = arith.maximumf %23, %24 : vector<8x128xf32>
    %cst_17 = arith.constant dense<0.000000e+00> : vector<8x128xf32>
    %26 = tpu.matmul %25, %5, %cst_17 {dimension_numbers = #tpu.dot_dimension_numbers<[1], [0], [0], [1], [0, 0, 1, 1], [], []>} : vector<8x128xf32>, vector<128x128xf32>, vector<8x128xf32> -> vector<8x128xf32>
    %27 = vector.broadcast %12 : vector<1x128xf32> to vector<8x128xf32>
    %28 = arith.addf %26, %27 : vector<8x128xf32>
    %29 = vector.shape_cast %28 : vector<8x128xf32> to vector<1x8x128xf32>
    %cst_18 = arith.constant dense<0.000000e+00> : vector<1x128xf32>
    %30 = vector.multi_reduction <add>, %29, %cst_18 [1] : vector<1x8x128xf32> to vector<1x128xf32>
    %cst_19 = arith.constant 1.250000e-01 : f32
    %31 = vector.broadcast %cst_19 : f32 to vector<1x128xf32>
    %32 = arith.mulf %30, %31 : vector<1x128xf32>
    %cst_20 = arith.constant dense<0.000000e+00> : vector<1x128xf32>
    %33 = tpu.matmul %32, %6, %cst_20 {dimension_numbers = #tpu.dot_dimension_numbers<[1], [0], [0], [1], [0, 0, 1, 1], [], []>} : vector<1x128xf32>, vector<128x128xf32>, vector<1x128xf32> -> vector<1x128xf32>
    %34 = arith.addf %33, %13 : vector<1x128xf32>
    %cst_21 = arith.constant dense<0.000000e+00> : vector<8x128xf32>
    %35 = tpu.matmul %1, %3, %cst_21 {dimension_numbers = #tpu.dot_dimension_numbers<[1], [0], [0], [1], [0, 0, 1, 1], [], []>} : vector<8x8xf32>, vector<8x128xf32>, vector<8x128xf32> -> vector<8x128xf32>
    %36 = vector.shape_cast %35 : vector<8x128xf32> to vector<1x8x128xf32>
    %37 = vector.shape_cast %34 : vector<1x128xf32> to vector<1x1x128xf32>
    %38 = vector.broadcast %37 : vector<1x1x128xf32> to vector<1x8x128xf32>
    %39 = arith.addf %36, %38 : vector<1x8x128xf32>
    %cst_22 = arith.constant 0.000000e+00 : f32
    %40 = vector.broadcast %cst_22 : f32 to vector<1x8x128xf32>
    %41 = arith.maximumf %39, %40 : vector<1x8x128xf32>
    %42 = vector.shape_cast %41 : vector<1x8x128xf32> to vector<8x128xf32>
    %cst_23 = arith.constant dense<0.000000e+00> : vector<8x128xf32>
    %43 = tpu.matmul %42, %7, %cst_23 {dimension_numbers = #tpu.dot_dimension_numbers<[1], [0], [0], [1], [0, 0, 1, 1], [], []>} : vector<8x128xf32>, vector<128x128xf32>, vector<8x128xf32> -> vector<8x128xf32>
    %44 = vector.broadcast %14 : vector<1x128xf32> to vector<8x128xf32>
    %45 = arith.addf %43, %44 : vector<8x128xf32>
    %cst_24 = arith.constant 0.000000e+00 : f32
    %46 = vector.broadcast %cst_24 : f32 to vector<8x128xf32>
    %47 = arith.maximumf %45, %46 : vector<8x128xf32>
    %cst_25 = arith.constant dense<0.000000e+00> : vector<8x128xf32>
    %48 = tpu.matmul %47, %8, %cst_25 {dimension_numbers = #tpu.dot_dimension_numbers<[1], [0], [0], [1], [0, 0, 1, 1], [], []>} : vector<8x128xf32>, vector<128x128xf32>, vector<8x128xf32> -> vector<8x128xf32>
    %49 = vector.broadcast %15 : vector<1x128xf32> to vector<8x128xf32>
    %50 = arith.addf %48, %49 : vector<8x128xf32>
    %51 = math.absf %50 : vector<8x128xf32>
    %cst_26 = arith.constant 0.000000e+00 : f32
    %52 = vector.broadcast %cst_26 : f32 to vector<8x128xf32>
    %53 = arith.subf %52, %51 : vector<8x128xf32>
    %54 = math.exp %53 : vector<8x128xf32>
    %55 = math.log1p %54 : vector<8x128xf32>
    %cst_27 = arith.constant 0.000000e+00 : f32
    %56 = vector.broadcast %cst_27 : f32 to vector<8x128xf32>
    %57 = arith.maximumf %50, %56 : vector<8x128xf32>
    %58 = arith.addf %55, %57 : vector<8x128xf32>
    %cst_28 = arith.constant 1.000000e-01 : f32
    %59 = vector.broadcast %cst_28 : f32 to vector<8x128xf32>
    %60 = arith.addf %58, %59 : vector<8x128xf32>
    %61 = tpu.iota {dimensions = array<i32: 1>} : vector<8x128xi32>
    %c2_i32 = arith.constant 2 : i32
    %62 = vector.broadcast %c2_i32 : i32 to vector<8x128xi32>
    %63 = arith.cmpi sge, %61, %62 : vector<8x128xi32>
    %c4_i32 = arith.constant 4 : i32
    %64 = vector.broadcast %c4_i32 : i32 to vector<8x128xi32>
    %65 = arith.cmpi slt, %61, %64 : vector<8x128xi32>
    %66 = arith.andi %63, %65 : vector<8x128xi1>
    %67 = arith.select %66, %60, %50 : vector<8x128xi1>, vector<8x128xf32>
    %c0_29 = arith.constant 0 : index
    %c0_30 = arith.constant 0 : index
    %68 = vector.load %arg6[%c0_29, %c0_30] : memref<8x128xf32, #tpu.memory_space<vmem>>, vector<8x128xf32>
    tpu.vector_store %arg6[%c0_29, %c0_30], %67 {strides = array<i32>} : memref<8x128xf32, #tpu.memory_space<vmem>>, vector<8x128xf32>,
    return
  }
  func.func @transform_0(%arg0: i32) -> (i32, i32) {
    %c0_i32 = arith.constant 0 : i32
    %c0_i32_0 = arith.constant 0 : i32
    return %arg0, %c0_i32 : i32, i32
  }
  func.func @transform_1(%arg0: i32) -> (i32, i32) {
    %c0_i32 = arith.constant 0 : i32
    %c0_i32_0 = arith.constant 0 : i32
    return %arg0, %c0_i32 : i32, i32
  }
  func.func @transform_2(%arg0: i32) -> (i32, i32) {
    %c0_i32 = arith.constant 0 : i32
    %c0_i32_0 = arith.constant 0 : i32
    %c0_i32_1 = arith.constant 0 : i32
    return %c0_i32, %c0_i32_0 : i32, i32
  }
  func.func @transform_3(%arg0: i32) -> (i32, i32) {
    %c0_i32 = arith.constant 0 : i32
    %c0_i32_0 = arith.constant 0 : i32
    %c0_i32_1 = arith.constant 0 : i32
    return %c0_i32, %c0_i32_0 : i32, i32
  }
  func.func @transform_4(%arg0: i32) -> (i32, i32) {
    %c0_i32 = arith.constant 0 : i32
    %c0_i32_0 = arith.constant 0 : i32
    %c0_i32_1 = arith.constant 0 : i32
    return %c0_i32, %c0_i32_0 : i32, i32
  }
  func.func @transform_5(%arg0: i32) -> (i32, i32) {
    %c0_i32 = arith.constant 0 : i32
    %c0_i32_0 = arith.constant 0 : i32
    return %arg0, %c0_i32 : i32, i32
  }
}

</mosaic_0001>

<llo_original>
// kernel: tpu_custom_call.1
$region0: #{tpu_custom_call.1}
  #allocation0 [shape = 'u32[]', space=smem, size = 0x4, offset = 0x4, fixed_abs, tag = 'smem constant byte address 0x4 - core index']
  #allocation1 [shape = 'u32[144,128]{1,0:T(1,128)}', space=vmem, size = 0x12000, scoped, tag = 'internal scratch']
  %s0 = inlined_call_operand.vmem [shape: f32[16,8], index: 0, kind: input, shape index: {}]
  %s1 = inlined_call_operand.vmem [shape: f32[16,8], index: 1, kind: input, shape index: {}]
  %s2 = inlined_call_operand.vmem [shape: f32[16,128], index: 2, kind: input, shape index: {}]
  %s3 = inlined_call_operand.hbm [shape: f32[640,128], index: 3, kind: input, shape index: {}]
  %s4 = inlined_call_operand.vmem [shape: f32[8,128], index: 4, kind: input, shape index: {}]
  %s5 = inlined_call_operand.hbm [shape: f32[16,128], index: 5, kind: output, shape index: {}]
  %s6 = sld [smem:[#allocation0]]
  $region57: #{tpu_custom_call.1} parent=0
    _
  %s8 = ssub.s32 1, %s6
  %s9 = scalar_select 0, %s8, %s6
  $region1: #{tpu_custom_call.1} parent=0
    #allocation2 [shape = 'u8[327680]{0}', space=vmem, size = 0x50000, scoped, tag = 'input window, operand 3, single buffered']
    #allocation3 [shape = 's32[2]{0}', space=sflag, size = 0x8, scoped, tag = 'scoped memory for tpu_custom_call.1']
    #allocation4 [shape = 's32[2]{0}', space=sflag, size = 0x8, scoped, tag = 'scoped memory for tpu_custom_call.1']
    #allocation5 [shape = 'u8[8192]{0}', space=vmem, size = 0x2000, scoped, tag = 'output window, operand 0']
    %10 = vsyncpa [#allocation3], 0
    %11 = vsyncpa [#allocation4], 0
    %s12 = scalar_lea.sflag [#allocation4], 1
    %13 = vsyncpa %s12, 0
    loop: start=0, step=1, limit=4
    $region2: #{tpu_custom_call.1} parent=1 // loop_pre_header
      _
    $region3: #{tpu_custom_call.1} parent=1 // loop_header
      %s15 = sphi 0, %s19
      %p16 = scmp.ge.s32.totalorder %s15, 4
      %s25 = sphi 0, %s27
      %s28 = sphi 0, %s25
      %s29 = sphi 0, %s28
      %s45 = sphi 0, %s29
      %s51 = sphi 0, %s53
      %s54 = sphi 0, %s51
      %s55 = sphi 0, %s54
      %s71 = sphi 0, %s55
      %s75 = sphi 0, %s75
      %s77 = sphi 0, %s75
      %s78 = sphi 0, %s77
      %s92 = sphi 0, %s78
      %s96 = sphi 0, %s96
      %s98 = sphi 0, %s96
      %s99 = sphi 0, %s98
      %s113 = sphi 0, %s99
      %s117 = sphi 0, %s117
      %s119 = sphi 0, %s117
      %s120 = sphi 0, %s119
      %s134 = sphi 0, %s120
      %s140 = sphi 0, %s142
      %s143 = sphi 0, %s140
      %s144 = sphi 0, %s143
      %s160 = sphi 0, %s144
    $region4: #{tpu_custom_call.1} parent=1 // loop_header_branch
      %18 = sbr.rel (%p16) target = $region8
    $region5: #{tpu_custom_call.1} parent=1 // loop_body
      %s20 = ssub.s32 %s15, 1
      %s21 = ssub.s32 %s15, 2
      %s22 = sadd.s32 %s15, 1
      %s23 = ssub.s32 %s15, %s22
      %p24 = scmp.eq.s32.totalorder %s23, 0
      %s26 = sadd.s32 %s25, 1
      %s27 = scalar_select %p24, %s25, %s26
      %p30 = pneg %p24
      %p31 = scmp.eq.s32.totalorder %s15, 1
      %p32 = por %p30, %p31
      %p33 = scmp.ne.s32.totalorder %s25, %s28
      %p34 = scmp.eq.s32.totalorder %s15, 0
      %p35 = por %p33, %p34
      %p36 = scmp.ne.s32.totalorder %s25, %s28
      %p37 = scmp.eq.s32.totalorder %s20, 1
      %p38 = por %p36, %p37
      %p39 = scmp.ne.s32.totalorder %s28, %s29
      %p40 = scmp.eq.s32.totalorder %s20, 0
      %p41 = por %p39, %p40
      %p42 = scmp.ne.s32.totalorder %s28, %s29
      %p43 = scmp.eq.s32.totalorder %s21, 1
      %p44 = por %p42, %p43
      %p46 = scmp.ne.s32.totalorder %s29, %s45
      %p47 = scmp.eq.s32.totalorder %s21, 0
      %p48 = por %p46, %p47
      %s49 = ssub.s32 %s15, %s22
      %p50 = scmp.eq.s32.totalorder %s49, 0
      %s52 = sadd.s32 %s51, 1
      %s53 = scalar_select %p50, %s51, %s52
      %p56 = pneg %p50
      %p57 = scmp.eq.s32.totalorder %s15, 1
      %p58 = por %p56, %p57
      %p59 = scmp.ne.s32.totalorder %s51, %s54
      %p60 = scmp.eq.s32.totalorder %s15, 0
      %p61 = por %p59, %p60
      %p62 = scmp.ne.s32.totalorder %s51, %s54
      %p63 = scmp.eq.s32.totalorder %s20, 1
      %p64 = por %p62, %p63
      %p65 = scmp.ne.s32.totalorder %s54, %s55
      %p66 = scmp.eq.s32.totalorder %s20, 0
      %p67 = por %p65, %p66
      %p68 = scmp.ne.s32.totalorder %s54, %s55
      %p69 = scmp.eq.s32.totalorder %s21, 1
      %p70 = por %p68, %p69
      %p72 = scmp.ne.s32.totalorder %s55, %s71
      %p73 = scmp.eq.s32.totalorder %s21, 0
      %p74 = por %p72, %p73
      %s76 = sadd.s32 %s75, 1
      %p79 = scmp.eq.s32.totalorder %s15, 1
      %p80 = scmp.ne.s32.totalorder %s75, %s77
      %p81 = scmp.eq.s32.totalorder %s15, 0
      %p82 = por %p80, %p81
      %p83 = scmp.ne.s32.totalorder %s75, %s77
      %p84 = scmp.eq.s32.totalorder %s20, 1
      %p85 = por %p83, %p84
      %p86 = scmp.ne.s32.totalorder %s77, %s78
      %p87 = scmp.eq.s32.totalorder %s20, 0
      %p88 = por %p86, %p87
      %p89 = scmp.ne.s32.totalorder %s77, %s78
      %p90 = scmp.eq.s32.totalorder %s21, 1
      %p91 = por %p89, %p90
      %p93 = scmp.ne.s32.totalorder %s78, %s92
      %p94 = scmp.eq.s32.totalorder %s21, 0
      %p95 = por %p93, %p94
      %s97 = sadd.s32 %s96, 1
      %p100 = scmp.eq.s32.totalorder %s15, 1
      %p101 = scmp.ne.s32.totalorder %s96, %s98
      %p102 = scmp.eq.s32.totalorder %s15, 0
      %p103 = por %p101, %p102
      %p104 = scmp.ne.s32.totalorder %s96, %s98
      %p105 = scmp.eq.s32.totalorder %s20, 1
      %p106 = por %p104, %p105
      %p107 = scmp.ne.s32.totalorder %s98, %s99
      %p108 = scmp.eq.s32.totalorder %s20, 0
      %p109 = por %p107, %p108
      %p110 = scmp.ne.s32.totalorder %s98, %s99
      %p111 = scmp.eq.s32.totalorder %s21, 1
      %p112 = por %p110, %p111
      %p114 = scmp.ne.s32.totalorder %s99, %s113
      %p115 = scmp.eq.s32.totalorder %s21, 0
      %p116 = por %p114, %p115
      %s118 = sadd.s32 %s117, 1
      %p121 = scmp.eq.s32.totalorder %s15, 1
      %p122 = scmp.ne.s32.totalorder %s117, %s119
      %p123 = scmp.eq.s32.totalorder %s15, 0
      %p124 = por %p122, %p123
      %p125 = scmp.ne.s32.totalorder %s117, %s119
      %p126 = scmp.eq.s32.totalorder %s20, 1
      %p127 = por %p125, %p126
      %p128 = scmp.ne.s32.totalorder %s119, %s120
      %p129 = scmp.eq.s32.totalorder %s20, 0
      %p130 = por %p128, %p129
      %p131 = scmp.ne.s32.totalorder %s119, %s120
      %p132 = scmp.eq.s32.totalorder %s21, 1
      %p133 = por %p131, %p132
      %p135 = scmp.ne.s32.totalorder %s120, %s134
      %p136 = scmp.eq.s32.totalorder %s21, 0
      %p137 = por %p135, %p136
      %s138 = ssub.s32 %s15, %s22
      %p139 = scmp.eq.s32.totalorder %s138, 0
      %s141 = sadd.s32 %s140, 1
      %s142 = scalar_select %p139, %s140, %s141
      %p145 = pneg %p139
      %p146 = scmp.eq.s32.totalorder %s15, 1
      %p147 = por %p145, %p146
      %p148 = scmp.ne.s32.totalorder %s140, %s143
      %p149 = scmp.eq.s32.totalorder %s15, 0
      %p150 = por %p148, %p149
      %p151 = scmp.ne.s32.totalorder %s140, %s143
      %p152 = scmp.eq.s32.totalorder %s20, 1
      %p153 = por %p151, %p152
      %p154 = scmp.ne.s32.totalorder %s143, %s144
      %p155 = scmp.eq.s32.totalorder %s20, 0
      %p156 = por %p154, %p155
      %p157 = scmp.ne.s32.totalorder %s143, %s144
      %p158 = scmp.eq.s32.totalorder %s21, 1
      %p159 = por %p157, %p158
      %p161 = scmp.ne.s32.totalorder %s144, %s160
      %p162 = scmp.eq.s32.totalorder %s21, 0
      %p163 = por %p161, %p162
      %p164 = scmp.le.s32.totalorder 1, %s15
      %p165 = scmp.lt.s32.totalorder %s15, 3
      %p166 = pnand %p164, %p165
      %p167 = pneg %p166
      // Predicated region
      $region9: #{tpu_custom_call.1} parent=5 // pred_check
        _
      $region10: #{tpu_custom_call.1} parent=5 // pred_check_branch
        %169 = sbr.rel (%p166) target = $region12
      $region11: #{tpu_custom_call.1} parent=5 // pred_region
        %s170 = ssub.s32 %s15, 1
        // Predicated region
        $region13: #{tpu_custom_call.1} parent=11 // pred_check
          %p171 = pneg %p88
        $region14: #{tpu_custom_call.1} parent=11 // pred_check_branch
          %173 = sbr.rel (%p171) target = $region16
        $region15: #{tpu_custom_call.1} parent=11 // pred_region
          _
        $region16: #{tpu_custom_call.1} parent=11 // pred_fallthru
          _
        // Predicated region
        $region17: #{tpu_custom_call.1} parent=11 // pred_check
          %p174 = pneg %p109
        $region18: #{tpu_custom_call.1} parent=11 // pred_check_branch
          %176 = sbr.rel (%p174) target = $region20
        $region19: #{tpu_custom_call.1} parent=11 // pred_region
          %s178 = ssub.s32 10240, 10240
          %179 = vsyncadd [#allocation3], %s178
          %s180 = sshll.u32 [#allocation2], 4
          %s181 = int_to_ptr.vmem [resolvable:$true] %s180
          %186 = dma.hbm_to_vmem [thread:$0]  %s3, 10240, %s181, [#allocation3], 128, 128, 8
        $region20: #{tpu_custom_call.1} parent=11 // pred_fallthru
          _
        // Predicated region
        $region21: #{tpu_custom_call.1} parent=11 // pred_check
          %p187 = pneg %p130
        $region22: #{tpu_custom_call.1} parent=11 // pred_check_branch
          %189 = sbr.rel (%p187) target = $region24
        $region23: #{tpu_custom_call.1} parent=11 // pred_region
          _
        $region24: #{tpu_custom_call.1} parent=11 // pred_fallthru
          _
      $region12: #{tpu_custom_call.1} parent=5 // pred_fallthru
        _
      %p190 = scmp.lt.s32.totalorder %s15, 2
      // Predicated region
      $region25: #{tpu_custom_call.1} parent=5 // pred_check
        %p191 = pneg %p190
      $region26: #{tpu_custom_call.1} parent=5 // pred_check_branch
        %193 = sbr.rel (%p191) target = $region28
      $region27: #{tpu_custom_call.1} parent=5 // pred_region
        // Predicated region
        $region29: #{tpu_custom_call.1} parent=27 // pred_check
          %p194 = pneg %p35
        $region30: #{tpu_custom_call.1} parent=27 // pred_check_branch
          %196 = sbr.rel (%p194) target = $region32
        $region31: #{tpu_custom_call.1} parent=27 // pred_region
          %p197 = scmp.lt.s32.totalorder %s15, 1
          %s198 = scalar_select %p197, %s15, 1
          %s199 = smul.addr %s198, 8
          %s200 = scalar_lea.vmem %s0, %s199
        $region32: #{tpu_custom_call.1} parent=27 // pred_fallthru
          _
        // Predicated region
        $region33: #{tpu_custom_call.1} parent=27 // pred_check
          %p201 = pneg %p61
        $region34: #{tpu_custom_call.1} parent=27 // pred_check_branch
          %203 = sbr.rel (%p201) target = $region36
        $region35: #{tpu_custom_call.1} parent=27 // pred_region
          %p204 = scmp.lt.s32.totalorder %s15, 1
          %s205 = scalar_select %p204, %s15, 1
          %s206 = smul.addr %s205, 8
          %s207 = scalar_lea.vmem %s1, %s206
        $region36: #{tpu_custom_call.1} parent=27 // pred_fallthru
          _
      $region28: #{tpu_custom_call.1} parent=5 // pred_fallthru
        _
      %p208 = scmp.le.s32.totalorder 1, %s15
      %p209 = scmp.lt.s32.totalorder %s15, 3
      %p210 = pnand %p208, %p209
      %p211 = pneg %p210
      // Predicated region
      $region37: #{tpu_custom_call.1} parent=5 // pred_check
        _
      $region38: #{tpu_custom_call.1} parent=5 // pred_check_branch
        %213 = sbr.rel (%p210) target = $region40
      $region39: #{tpu_custom_call.1} parent=5 // pred_region
        %s214 = ssub.s32 %s15, 1
        // Predicated region
        $region41: #{tpu_custom_call.1} parent=39 // pred_check
          %p215 = pneg %p109
        $region42: #{tpu_custom_call.1} parent=39 // pred_check_branch
          %217 = sbr.rel (%p215) target = $region44
        $region43: #{tpu_custom_call.1} parent=39 // pred_region
          %218 = dma.done [#allocation3], 10240
        $region44: #{tpu_custom_call.1} parent=39 // pred_fallthru
          _
        %p219 = scmp.lt.s32.totalorder %s20, 1
        %s220 = scalar_select %p219, %s20, 1
        %s221 = smul.addr %s220, 8
        %s222 = scalar_lea.vmem %s0, %s221
        %p223 = pneg %p41
        %p224 = pneg %p38
        %p225 = scmp.lt.s32.totalorder %s20, 1
        %s226 = scalar_select %p225, %s20, 1
        %s227 = smul.addr %s226, 8
        %s228 = scalar_lea.vmem %s1, %s227
        %p229 = pneg %p67
        %p230 = pneg %p64
        %p231 = pneg %p88
        %p232 = pneg %p85
        %p233 = pneg %p109
        %p234 = pneg %p106
        %p235 = pneg %p130
        %p236 = pneg %p127
        %p237 = pneg %p156
        %p238 = pneg %p153
        %s239 = sand.u32 %s143, 1
        %s240 = scalar_lea.sflag [#allocation4], %s239
        %s241 = sand.u32 %s143, 1
        %s242 = smul.addr %s241, 8
        %s243 = scalar_lea.vmem [#allocation5], %s242
        %p244 = scmp.lt.s32.totalorder %s20, 1
        %s245 = scalar_select %p244, %s20, 1
        %s246 = smul.addr %s245, 8
        %s247 = scalar_lea.vmem %s0, %s246
        %p248 = scmp.lt.s32.totalorder %s20, 1
        %s249 = scalar_select %p248, %s20, 1
        %s250 = smul.addr %s249, 8
        %s251 = scalar_lea.vmem %s1, %s250
        %v252 = vld [vmem:[%s247] sm:$0xff]
        %v253 = vld [vmem:[%s251] sm:$0xff]
        %v254 = vld [vmem:[%s2] sm:$0xff]
        %v255 = vld [vmem:[%s2 + $0x8] sm:$0xff]
        %v256 = vld [vmem:[#allocation2] sm:$0xff]
        %v257 = vld [vmem:[#allocation2 + $0x8] sm:$0xff]
        %v258 = vld [vmem:[#allocation2 + $0x10] sm:$0xff]
        %v259 = vld [vmem:[#allocation2 + $0x18] sm:$0xff]
        %v260 = vld [vmem:[#allocation2 + $0x20] sm:$0xff]
        %v261 = vld [vmem:[#allocation2 + $0x28] sm:$0xff]
        %v262 = vld [vmem:[#allocation2 + $0x30] sm:$0xff]
        %v263 = vld [vmem:[#allocation2 + $0x38] sm:$0xff]
        %v264 = vld [vmem:[#allocation2 + $0x40] sm:$0xff]
        %v265 = vld [vmem:[#allocation2 + $0x48] sm:$0xff]
        %v266 = vld [vmem:[#allocation2 + $0x50] sm:$0xff]
        %v267 = vld [vmem:[#allocation2 + $0x58] sm:$0xff]
        %v268 = vld [vmem:[#allocation2 + $0x60] sm:$0xff]
        %v269 = vld [vmem:[#allocation2 + $0x68] sm:$0xff]
        %v270 = vld [vmem:[#allocation2 + $0x70] sm:$0xff]
        %v271 = vld [vmem:[#allocation2 + $0x78] sm:$0xff]
        %v272 = vld [vmem:[#allocation2 + $0x80] sm:$0xff]
        %v273 = vld [vmem:[#allocation2 + $0x88] sm:$0xff]
        %v274 = vld [vmem:[#allocation2 + $0x90] sm:$0xff]
        %v275 = vld [vmem:[#allocation2 + $0x98] sm:$0xff]
        %v276 = vld [vmem:[#allocation2 + $0xa0] sm:$0xff]
        %v277 = vld [vmem:[#allocation2 + $0xa8] sm:$0xff]
        %v278 = vld [vmem:[#allocation2 + $0xb0] sm:$0xff]
        %v279 = vld [vmem:[#allocation2 + $0xb8] sm:$0xff]
        %v280 = vld [vmem:[#allocation2 + $0xc0] sm:$0xff]
        %v281 = vld [vmem:[#allocation2 + $0xc8] sm:$0xff]
        %v282 = vld [vmem:[#allocation2 + $0xd0] sm:$0xff]
        %v283 = vld [vmem:[#allocation2 + $0xd8] sm:$0xff]
        %v284 = vld [vmem:[#allocation2 + $0xe0] sm:$0xff]
        %v285 = vld [vmem:[#allocation2 + $0xe8] sm:$0xff]
        %v286 = vld [vmem:[#allocation2 + $0xf0] sm:$0xff]
        %v287 = vld [vmem:[#allocation2 + $0xf8] sm:$0xff]
        %v288 = vld [vmem:[#allocation2 + $0x100] sm:$0xff]
        %v289 = vld [vmem:[#allocation2 + $0x108] sm:$0xff]
        %v290 = vld [vmem:[#allocation2 + $0x110] sm:$0xff]
        %v291 = vld [vmem:[#allocation2 + $0x118] sm:$0xff]
        %v292 = vld [vmem:[#allocation2 + $0x120] sm:$0xff]
        %v293 = vld [vmem:[#allocation2 + $0x128] sm:$0xff]
        %v294 = vld [vmem:[#allocation2 + $0x130] sm:$0xff]
        %v295 = vld [vmem:[#allocation2 + $0x138] sm:$0xff]
        %v296 = vld [vmem:[#allocation2 + $0x140] sm:$0xff]
        %v297 = vld [vmem:[#allocation2 + $0x148] sm:$0xff]
        %v298 = vld [vmem:[#allocation2 + $0x150] sm:$0xff]
        %v299 = vld [vmem:[#allocation2 + $0x158] sm:$0xff]
        %v300 = vld [vmem:[#allocation2 + $0x160] sm:$0xff]
        %v301 = vld [vmem:[#allocation2 + $0x168] sm:$0xff]
        %v302 = vld [vmem:[#allocation2 + $0x170] sm:$0xff]
        %v303 = vld [vmem:[#allocation2 + $0x178] sm:$0xff]
        %v304 = vld [vmem:[#allocation2 + $0x180] sm:$0xff]
        %v305 = vld [vmem:[#allocation2 + $0x188] sm:$0xff]
        %v306 = vld [vmem:[#allocation2 + $0x190] sm:$0xff]
        %v307 = vld [vmem:[#allocation2 + $0x198] sm:$0xff]
        %v308 = vld [vmem:[#allocation2 + $0x1a0] sm:$0xff]
        %v309 = vld [vmem:[#allocation2 + $0x1a8] sm:$0xff]
        %v310 = vld [vmem:[#allocation2 + $0x1b0] sm:$0xff]
        %v311 = vld [vmem:[#allocation2 + $0x1b8] sm:$0xff]
        %v312 = vld [vmem:[#allocation2 + $0x1c0] sm:$0xff]
        %v313 = vld [vmem:[#allocation2 + $0x1c8] sm:$0xff]
        %v314 = vld [vmem:[#allocation2 + $0x1d0] sm:$0xff]
        %v315 = vld [vmem:[#allocation2 + $0x1d8] sm:$0xff]
        %v316 = vld [vmem:[#allocation2 + $0x1e0] sm:$0xff]
        %v317 = vld [vmem:[#allocation2 + $0x1e8] sm:$0xff]
        %v318 = vld [vmem:[#allocation2 + $0x1f0] sm:$0xff]
        %v319 = vld [vmem:[#allocation2 + $0x1f8] sm:$0xff]
        %v320 = vld [vmem:[#allocation2 + $0x200] sm:$0xff]
        %v321 = vld [vmem:[#allocation2 + $0x208] sm:$0xff]
        %v322 = vld [vmem:[#allocation2 + $0x210] sm:$0xff]
        %v323 = vld [vmem:[#allocation2 + $0x218] sm:$0xff]
        %v324 = vld [vmem:[#allocation2 + $0x220] sm:$0xff]
        %v325 = vld [vmem:[#allocation2 + $0x228] sm:$0xff]
        %v326 = vld [vmem:[#allocation2 + $0x230] sm:$0xff]
        %v327 = vld [vmem:[#allocation2 + $0x238] sm:$0xff]
        %v328 = vld [vmem:[#allocation2 + $0x240] sm:$0xff]
        %v329 = vld [vmem:[#allocation2 + $0x248] sm:$0xff]
        %v330 = vld [vmem:[#allocation2 + $0x250] sm:$0xff]
        %v331 = vld [vmem:[#allocation2 + $0x258] sm:$0xff]
        %v332 = vld [vmem:[#allocation2 + $0x260] sm:$0xff]
        %v333 = vld [vmem:[#allocation2 + $0x268] sm:$0xff]
        %v334 = vld [vmem:[#allocation2 + $0x270] sm:$0xff]
        %v335 = vld [vmem:[#allocation2 + $0x278] sm:$0xff]
        %v336 = vld [vmem:[%s4] sm:$0xff]
        %v337 = vlaneseq
        %v338 = vshrl.u32 %v337, 7
        %v339 = vsub.s32 0, %v338
        %v340 = vrot.slane %v336, %v339
        %vm341 = vcmask 64512
        %v343 = vsel %vm341, %v252, 0
        %345 = vmatprep.subr.mxu0 0.0
        %346 = vmatpush1.msra.mxu0 %v254
        %347 = vmatprep.subr.mxu0 0.0
        %348 = vmatpush1.msra.mxu0 0.0
        %349 = vmatprep.subr.mxu0 0.0
        %350 = vmatpush1.msra.mxu0 0.0
        %351 = vmatprep.subr.mxu0 0.0
        %352 = vmatpush1.msra.mxu0 0.0
        %353 = vmatprep.subr.mxu0 0.0
        %354 = vmatpush1.msra.mxu0 0.0
        %355 = vmatprep.subr.mxu0 0.0
        %356 = vmatpush1.msra.mxu0 0.0
        %357 = vmatprep.subr.mxu0 0.0
        %358 = vmatpush1.msra.mxu0 0.0
        %359 = vmatprep.subr.mxu0 0.0
        %360 = vmatpush1.msra.mxu0 0.0
        %361 = vmatprep.subr.mxu0 0.0
        %362 = vmatpush1.msra.mxu0 0.0
        %363 = vmatprep.subr.mxu0 0.0
        %364 = vmatpush1.msra.mxu0 0.0
        %365 = vmatprep.subr.mxu0 0.0
        %366 = vmatpush1.msra.mxu0 0.0
        %367 = vmatprep.subr.mxu0 0.0
        %368 = vmatpush1.msra.mxu0 0.0
        %369 = vmatprep.subr.mxu0 0.0
        %370 = vmatpush1.msra.mxu0 0.0
        %371 = vmatprep.subr.mxu0 0.0
        %372 = vmatpush1.msra.mxu0 0.0
        %373 = vmatprep.subr.mxu0 0.0
        %374 = vmatpush1.msra.mxu0 0.0
        %375 = vmatprep.subr.mxu0 0.0
        %376 = vmatpush1.msra.mxu0 0.0
        %377 = vmatprep.subr.mxu0 0.0
        %378 = vmatpush1.msra.mxu0 0.0
        %379 = vmatprep.subr.mxu0 0.0
        %380 = vmatpush1.msra.mxu0 0.0
        %381 = vmatprep.subr.mxu0 0.0
        %382 = vmatpush1.msra.mxu0 0.0
        %383 = vmatprep.subr.mxu0 0.0
        %384 = vmatpush1.msra.mxu0 0.0
        %385 = vmatprep.subr.mxu0 0.0
        %386 = vmatpush1.msra.mxu0 0.0
        %387 = vmatprep.subr.mxu0 0.0
        %388 = vmatpush1.msra.mxu0 0.0
        %389 = vmatprep.subr.mxu0 0.0
        %390 = vmatpush1.msra.mxu0 0.0
        %391 = vmatprep.subr.mxu0 0.0
        %392 = vmatpush1.msra.mxu0 0.0
        %393 = vmatprep.subr.mxu0 0.0
        %394 = vmatpush1.msra.mxu0 0.0
        %395 = vmatprep.subr.mxu0 0.0
        %396 = vmatpush1.msra.mxu0 0.0
        %397 = vmatprep.subr.mxu0 0.0
        %398 = vmatpush1.msra.mxu0 0.0
        %399 = vmatprep.subr.mxu0 0.0
        %400 = vmatpush1.msra.mxu0 0.0
        %401 = vmatprep.subr.mxu0 0.0
        %402 = vmatpush1.msra.mxu0 0.0
        %403 = vmatprep.subr.mxu0 0.0
        %404 = vmatpush1.msra.mxu0 0.0
        %405 = vmatprep.subr.mxu0 0.0
        %406 = vmatpush1.msra.mxu0 0.0
        %407 = vmatprep.subr.mxu0 0.0
        %408 = vmatpush1.msra.mxu0 0.0
        %409 = vmatprep.mubr.f32.mxu0 0.0
        %410 = vmatmul.mubr.f32.gmra.mrb[0].mxu0 %v343
        %v411 = vpop.f32.mrb[0].mxu0
        %v412 = vadd.f32 %v340, %v411
        %v413 = vpop.f32.mrb[0].mxu0
        %414 = vdwg.mxu0
        %v415 = vmax.f32 %v412, 0.0
        %v416 = vlaneseq
        %v417 = vshrl.u32 %v416, 7
        %v418 = vsub.s32 1, %v417
        %v419 = vrot.slane %v336, %v418
        %420 = vmatprep.subr.mxu0 0.0
        %421 = vmatpush1.msra.mxu0 %v256
        %422 = vmatprep.subr.mxu0 0.0
        %423 = vmatpush1.msra.mxu0 %v257
        %424 = vmatprep.subr.mxu0 0.0
        %425 = vmatpush1.msra.mxu0 %v258
        %426 = vmatprep.subr.mxu0 0.0
        %427 = vmatpush1.msra.mxu0 %v259
        %428 = vmatprep.subr.mxu0 0.0
        %429 = vmatpush1.msra.mxu0 %v260
        %430 = vmatprep.subr.mxu0 0.0
        %431 = vmatpush1.msra.mxu0 %v261
        %432 = vmatprep.subr.mxu0 0.0
        %433 = vmatpush1.msra.mxu0 %v262
        %434 = vmatprep.subr.mxu0 0.0
        %435 = vmatpush1.msra.mxu0 %v263
        %436 = vmatprep.subr.mxu0 0.0
        %437 = vmatpush1.msra.mxu0 %v264
        %438 = vmatprep.subr.mxu0 0.0
        %439 = vmatpush1.msra.mxu0 %v265
        %440 = vmatprep.subr.mxu0 0.0
        %441 = vmatpush1.msra.mxu0 %v266
        %442 = vmatprep.subr.mxu0 0.0
        %443 = vmatpush1.msra.mxu0 %v267
        %444 = vmatprep.subr.mxu0 0.0
        %445 = vmatpush1.msra.mxu0 %v268
        %446 = vmatprep.subr.mxu0 0.0
        %447 = vmatpush1.msra.mxu0 %v269
        %448 = vmatprep.subr.mxu0 0.0
        %449 = vmatpush1.msra.mxu0 %v270
        %450 = vmatprep.subr.mxu0 0.0
        %451 = vmatpush1.msra.mxu0 %v271
        %452 = vmatprep.subr.mxu0 0.0
        %453 = vmatpush1.msra.mxu0 0.0
        %454 = vmatprep.subr.mxu0 0.0
        %455 = vmatpush1.msra.mxu0 0.0
        %456 = vmatprep.subr.mxu0 0.0
        %457 = vmatpush1.msra.mxu0 0.0
        %458 = vmatprep.subr.mxu0 0.0
        %459 = vmatpush1.msra.mxu0 0.0
        %460 = vmatprep.subr.mxu0 0.0
        %461 = vmatpush1.msra.mxu0 0.0
        %462 = vmatprep.subr.mxu0 0.0
        %463 = vmatpush1.msra.mxu0 0.0
        %464 = vmatprep.subr.mxu0 0.0
        %465 = vmatpush1.msra.mxu0 0.0
        %466 = vmatprep.subr.mxu0 0.0
        %467 = vmatpush1.msra.mxu0 0.0
        %468 = vmatprep.subr.mxu0 0.0
        %469 = vmatpush1.msra.mxu0 0.0
        %470 = vmatprep.subr.mxu0 0.0
        %471 = vmatpush1.msra.mxu0 0.0
        %472 = vmatprep.subr.mxu0 0.0
        %473 = vmatpush1.msra.mxu0 0.0
        %474 = vmatprep.subr.mxu0 0.0
        %475 = vmatpush1.msra.mxu0 0.0
        %476 = vmatprep.subr.mxu0 0.0
        %477 = vmatpush1.msra.mxu0 0.0
        %478 = vmatprep.subr.mxu0 0.0
        %479 = vmatpush1.msra.mxu0 0.0
        %480 = vmatprep.subr.mxu0 0.0
        %481 = vmatpush1.msra.mxu0 0.0
        %482 = vmatprep.subr.mxu0 0.0
        %483 = vmatpush1.msra.mxu0 0.0
        %484 = vmatprep.mubr.f32.mxu0 0.0
        %485 = vmatmul.mubr.f32.gmra.mrb[0].mxu0 %v415
        %v486 = vpop.f32.mrb[0].mxu0
        %v487 = vadd.f32 %v419, %v486
        %v488 = vpop.f32.mrb[0].mxu0
        %489 = vdwg.mxu0
        %v490 = vmax.f32 %v487, 0.0
        %v491 = vlaneseq
        %v492 = vshrl.u32 %v491, 7
        %v493 = vsub.s32 2, %v492
        %v494 = vrot.slane %v336, %v493
        %495 = vmatprep.subr.mxu0 0.0
        %496 = vmatpush1.msra.mxu0 %v272
        %497 = vmatprep.subr.mxu0 0.0
        %498 = vmatpush1.msra.mxu0 %v273
        %499 = vmatprep.subr.mxu0 0.0
        %500 = vmatpush1.msra.mxu0 %v274
        %501 = vmatprep.subr.mxu0 0.0
        %502 = vmatpush1.msra.mxu0 %v275
        %503 = vmatprep.subr.mxu0 0.0
        %504 = vmatpush1.msra.mxu0 %v276
        %505 = vmatprep.subr.mxu0 0.0
        %506 = vmatpush1.msra.mxu0 %v277
        %507 = vmatprep.subr.mxu0 0.0
        %508 = vmatpush1.msra.mxu0 %v278
        %509 = vmatprep.subr.mxu0 0.0
        %510 = vmatpush1.msra.mxu0 %v279
        %511 = vmatprep.subr.mxu0 0.0
        %512 = vmatpush1.msra.mxu0 %v280
        %513 = vmatprep.subr.mxu0 0.0
        %514 = vmatpush1.msra.mxu0 %v281
        %515 = vmatprep.subr.mxu0 0.0
        %516 = vmatpush1.msra.mxu0 %v282
        %517 = vmatprep.subr.mxu0 0.0
        %518 = vmatpush1.msra.mxu0 %v283
        %519 = vmatprep.subr.mxu0 0.0
        %520 = vmatpush1.msra.mxu0 %v284
        %521 = vmatprep.subr.mxu0 0.0
        %522 = vmatpush1.msra.mxu0 %v285
        %523 = vmatprep.subr.mxu0 0.0
        %524 = vmatpush1.msra.mxu0 %v286
        %525 = vmatprep.subr.mxu0 0.0
        %526 = vmatpush1.msra.mxu0 %v287
        %527 = vmatprep.subr.mxu0 0.0
        %528 = vmatpush1.msra.mxu0 0.0
        %529 = vmatprep.subr.mxu0 0.0
        %530 = vmatpush1.msra.mxu0 0.0
        %531 = vmatprep.subr.mxu0 0.0
        %532 = vmatpush1.msra.mxu0 0.0
        %533 = vmatprep.subr.mxu0 0.0
        %534 = vmatpush1.msra.mxu0 0.0
        %535 = vmatprep.subr.mxu0 0.0
        %536 = vmatpush1.msra.mxu0 0.0
        %537 = vmatprep.subr.mxu0 0.0
        %538 = vmatpush1.msra.mxu0 0.0
        %539 = vmatprep.subr.mxu0 0.0
        %540 = vmatpush1.msra.mxu0 0.0
        %541 = vmatprep.subr.mxu0 0.0
        %542 = vmatpush1.msra.mxu0 0.0
        %543 = vmatprep.subr.mxu0 0.0
        %544 = vmatpush1.msra.mxu0 0.0
        %545 = vmatprep.subr.mxu0 0.0
        %546 = vmatpush1.msra.mxu0 0.0
        %547 = vmatprep.subr.mxu0 0.0
        %548 = vmatpush1.msra.mxu0 0.0
        %549 = vmatprep.subr.mxu0 0.0
        %550 = vmatpush1.msra.mxu0 0.0
        %551 = vmatprep.subr.mxu0 0.0
        %552 = vmatpush1.msra.mxu0 0.0
        %553 = vmatprep.subr.mxu0 0.0
        %554 = vmatpush1.msra.mxu0 0.0
        %555 = vmatprep.subr.mxu0 0.0
        %556 = vmatpush1.msra.mxu0 0.0
        %557 = vmatprep.subr.mxu0 0.0
        %558 = vmatpush1.msra.mxu0 0.0
        %559 = vmatprep.mubr.f32.mxu0 0.0
        %560 = vmatmul.mubr.f32.gmra.mrb[0].mxu0 %v490
        %v561 = vpop.f32.mrb[0].mxu0
        %v562 = vadd.f32 %v494, %v561
        %v563 = vpop.f32.mrb[0].mxu0
        %564 = vdwg.mxu0
        %v565 = vrot.slane %v562, 4
        %v566 = vadd.f32 %v562, %v565
        %v567 = vrot.slane %v566, 2
        %v568 = vadd.f32 %v566, %v567
        %v569 = vrot.slane %v568, 1
        %v570 = vadd.f32 %v568, %v569
        %v571 = vmul.f32 %v570, 0.125
        %v573 = vrot.slane %v336, 3
        %575 = vmatprep.subr.mxu0 0.0
        %576 = vmatpush1.msra.mxu0 %v288
        %577 = vmatprep.subr.mxu0 0.0
        %578 = vmatpush1.msra.mxu0 %v289
        %579 = vmatprep.subr.mxu0 0.0
        %580 = vmatpush1.msra.mxu0 %v290
        %581 = vmatprep.subr.mxu0 0.0
        %582 = vmatpush1.msra.mxu0 %v291
        %583 = vmatprep.subr.mxu0 0.0
        %584 = vmatpush1.msra.mxu0 %v292
        %585 = vmatprep.subr.mxu0 0.0
        %586 = vmatpush1.msra.mxu0 %v293
        %587 = vmatprep.subr.mxu0 0.0
        %588 = vmatpush1.msra.mxu0 %v294
        %589 = vmatprep.subr.mxu0 0.0
        %590 = vmatpush1.msra.mxu0 %v295
        %591 = vmatprep.subr.mxu0 0.0
        %592 = vmatpush1.msra.mxu0 %v296
        %593 = vmatprep.subr.mxu0 0.0
        %594 = vmatpush1.msra.mxu0 %v297
        %595 = vmatprep.subr.mxu0 0.0
        %596 = vmatpush1.msra.mxu0 %v298
        %597 = vmatprep.subr.mxu0 0.0
        %598 = vmatpush1.msra.mxu0 %v299
        %599 = vmatprep.subr.mxu0 0.0
        %600 = vmatpush1.msra.mxu0 %v300
        %601 = vmatprep.subr.mxu0 0.0
        %602 = vmatpush1.msra.mxu0 %v301
        %603 = vmatprep.subr.mxu0 0.0
        %604 = vmatpush1.msra.mxu0 %v302
        %605 = vmatprep.subr.mxu0 0.0
        %606 = vmatpush1.msra.mxu0 %v303
        %607 = vmatprep.subr.mxu0 0.0
        %608 = vmatpush1.msra.mxu0 0.0
        %609 = vmatprep.subr.mxu0 0.0
        %610 = vmatpush1.msra.mxu0 0.0
        %611 = vmatprep.subr.mxu0 0.0
        %612 = vmatpush1.msra.mxu0 0.0
        %613 = vmatprep.subr.mxu0 0.0
        %614 = vmatpush1.msra.mxu0 0.0
        %615 = vmatprep.subr.mxu0 0.0
        %616 = vmatpush1.msra.mxu0 0.0
        %617 = vmatprep.subr.mxu0 0.0
        %618 = vmatpush1.msra.mxu0 0.0
        %619 = vmatprep.subr.mxu0 0.0
        %620 = vmatpush1.msra.mxu0 0.0
        %621 = vmatprep.subr.mxu0 0.0
        %622 = vmatpush1.msra.mxu0 0.0
        %623 = vmatprep.subr.mxu0 0.0
        %624 = vmatpush1.msra.mxu0 0.0
        %625 = vmatprep.subr.mxu0 0.0
        %626 = vmatpush1.msra.mxu0 0.0
        %627 = vmatprep.subr.mxu0 0.0
        %628 = vmatpush1.msra.mxu0 0.0
        %629 = vmatprep.subr.mxu0 0.0
        %630 = vmatpush1.msra.mxu0 0.0
        %631 = vmatprep.subr.mxu0 0.0
        %632 = vmatpush1.msra.mxu0 0.0
        %633 = vmatprep.subr.mxu0 0.0
        %634 = vmatpush1.msra.mxu0 0.0
        %635 = vmatprep.subr.mxu0 0.0
        %636 = vmatpush1.msra.mxu0 0.0
        %637 = vmatprep.subr.mxu0 0.0
        %638 = vmatpush1.msra.mxu0 0.0
        %639 = vmatprep.mubr.f32.mxu0 0.0
        %640 = vmatmul.mubr.f32.gmra.mrb[0].mxu0 %v571
        %v641 = vpop.f32.mrb[0].mxu0
        %v642 = vadd.f32 %v573, %v641
        %v643 = vpop.f32.mrb[0].mxu0
        %644 = vdwg.mxu0
        %v646 = vsel %vm341, %v253, 0
        %648 = vmatprep.subr.mxu0 0.0
        %649 = vmatpush1.msra.mxu0 %v255
        %650 = vmatprep.subr.mxu0 0.0
        %651 = vmatpush1.msra.mxu0 0.0
        %652 = vmatprep.subr.mxu0 0.0
        %653 = vmatpush1.msra.mxu0 0.0
        %654 = vmatprep.subr.mxu0 0.0
        %655 = vmatpush1.msra.mxu0 0.0
        %656 = vmatprep.subr.mxu0 0.0
        %657 = vmatpush1.msra.mxu0 0.0
        %658 = vmatprep.subr.mxu0 0.0
        %659 = vmatpush1.msra.mxu0 0.0
        %660 = vmatprep.subr.mxu0 0.0
        %661 = vmatpush1.msra.mxu0 0.0
        %662 = vmatprep.subr.mxu0 0.0
        %663 = vmatpush1.msra.mxu0 0.0
        %664 = vmatprep.subr.mxu0 0.0
        %665 = vmatpush1.msra.mxu0 0.0
        %666 = vmatprep.subr.mxu0 0.0
        %667 = vmatpush1.msra.mxu0 0.0
        %668 = vmatprep.subr.mxu0 0.0
        %669 = vmatpush1.msra.mxu0 0.0
        %670 = vmatprep.subr.mxu0 0.0
        %671 = vmatpush1.msra.mxu0 0.0
        %672 = vmatprep.subr.mxu0 0.0
        %673 = vmatpush1.msra.mxu0 0.0
        %674 = vmatprep.subr.mxu0 0.0
        %675 = vmatpush1.msra.mxu0 0.0
        %676 = vmatprep.subr.mxu0 0.0
        %677 = vmatpush1.msra.mxu0 0.0
        %678 = vmatprep.subr.mxu0 0.0
        %679 = vmatpush1.msra.mxu0 0.0
        %680 = vmatprep.subr.mxu0 0.0
        %681 = vmatpush1.msra.mxu0 0.0
        %682 = vmatprep.subr.mxu0 0.0
        %683 = vmatpush1.msra.mxu0 0.0
        %684 = vmatprep.subr.mxu0 0.0
        %685 = vmatpush1.msra.mxu0 0.0
        %686 = vmatprep.subr.mxu0 0.0
        %687 = vmatpush1.msra.mxu0 0.0
        %688 = vmatprep.subr.mxu0 0.0
        %689 = vmatpush1.msra.mxu0 0.0
        %690 = vmatprep.subr.mxu0 0.0
        %691 = vmatpush1.msra.mxu0 0.0
        %692 = vmatprep.subr.mxu0 0.0
        %693 = vmatpush1.msra.mxu0 0.0
        %694 = vmatprep.subr.mxu0 0.0
        %695 = vmatpush1.msra.mxu0 0.0
        %696 = vmatprep.subr.mxu0 0.0
        %697 = vmatpush1.msra.mxu0 0.0
        %698 = vmatprep.subr.mxu0 0.0
        %699 = vmatpush1.msra.mxu0 0.0
        %700 = vmatprep.subr.mxu0 0.0
        %701 = vmatpush1.msra.mxu0 0.0
        %702 = vmatprep.subr.mxu0 0.0
        %703 = vmatpush1.msra.mxu0 0.0
        %704 = vmatprep.subr.mxu0 0.0
        %705 = vmatpush1.msra.mxu0 0.0
        %706 = vmatprep.subr.mxu0 0.0
        %707 = vmatpush1.msra.mxu0 0.0
        %708 = vmatprep.subr.mxu0 0.0
        %709 = vmatpush1.msra.mxu0 0.0
        %710 = vmatprep.subr.mxu0 0.0
        %711 = vmatpush1.msra.mxu0 0.0
        %712 = vmatprep.mubr.f32.mxu0 0.0
        %713 = vmatmul.mubr.f32.gmra.mrb[0].mxu0 %v646
        %v714 = vpop.f32.mrb[0].mxu0
        %v715 = vadd.f32 0.0, %v714
        %v716 = vpop.f32.mrb[0].mxu0
        %717 = vdwg.mxu0
        %v718 = vlaneseq
        %v719 = vshrl.u32 %v718, 7
        %v720 = vsub.s32 0, %v719
        %v721 = vrot.slane %v642, %v720
        %v722 = vadd.f32 %v715, %v721
        %v723 = vmax.f32 %v722, 0.0
        %v724 = vlaneseq
        %v725 = vshrl.u32 %v724, 7
        %v726 = vsub.s32 4, %v725
        %v727 = vrot.slane %v336, %v726
        %728 = vmatprep.subr.mxu0 0.0
        %729 = vmatpush1.msra.mxu0 %v304
        %730 = vmatprep.subr.mxu0 0.0
        %731 = vmatpush1.msra.mxu0 %v305
        %732 = vmatprep.subr.mxu0 0.0
        %733 = vmatpush1.msra.mxu0 %v306
        %734 = vmatprep.subr.mxu0 0.0
        %735 = vmatpush1.msra.mxu0 %v307
        %736 = vmatprep.subr.mxu0 0.0
        %737 = vmatpush1.msra.mxu0 %v308
        %738 = vmatprep.subr.mxu0 0.0
        %739 = vmatpush1.msra.mxu0 %v309
        %740 = vmatprep.subr.mxu0 0.0
        %741 = vmatpush1.msra.mxu0 %v310
        %742 = vmatprep.subr.mxu0 0.0
        %743 = vmatpush1.msra.mxu0 %v311
        %744 = vmatprep.subr.mxu0 0.0
        %745 = vmatpush1.msra.mxu0 %v312
        %746 = vmatprep.subr.mxu0 0.0
        %747 = vmatpush1.msra.mxu0 %v313
        %748 = vmatprep.subr.mxu0 0.0
        %749 = vmatpush1.msra.mxu0 %v314
        %750 = vmatprep.subr.mxu0 0.0
        %751 = vmatpush1.msra.mxu0 %v315
        %752 = vmatprep.subr.mxu0 0.0
        %753 = vmatpush1.msra.mxu0 %v316
        %754 = vmatprep.subr.mxu0 0.0
        %755 = vmatpush1.msra.mxu0 %v317
        %756 = vmatprep.subr.mxu0 0.0
        %757 = vmatpush1.msra.mxu0 %v318
        %758 = vmatprep.subr.mxu0 0.0
        %759 = vmatpush1.msra.mxu0 %v319
        %760 = vmatprep.subr.mxu0 0.0
        %761 = vmatpush1.msra.mxu0 0.0
        %762 = vmatprep.subr.mxu0 0.0
        %763 = vmatpush1.msra.mxu0 0.0
        %764 = vmatprep.subr.mxu0 0.0
        %765 = vmatpush1.msra.mxu0 0.0
        %766 = vmatprep.subr.mxu0 0.0
        %767 = vmatpush1.msra.mxu0 0.0
        %768 = vmatprep.subr.mxu0 0.0
        %769 = vmatpush1.msra.mxu0 0.0
        %770 = vmatprep.subr.mxu0 0.0
        %771 = vmatpush1.msra.mxu0 0.0
        %772 = vmatprep.subr.mxu0 0.0
        %773 = vmatpush1.msra.mxu0 0.0
        %774 = vmatprep.subr.mxu0 0.0
        %775 = vmatpush1.msra.mxu0 0.0
        %776 = vmatprep.subr.mxu0 0.0
        %777 = vmatpush1.msra.mxu0 0.0
        %778 = vmatprep.subr.mxu0 0.0
        %779 = vmatpush1.msra.mxu0 0.0
        %780 = vmatprep.subr.mxu0 0.0
        %781 = vmatpush1.msra.mxu0 0.0
        %782 = vmatprep.subr.mxu0 0.0
        %783 = vmatpush1.msra.mxu0 0.0
        %784 = vmatprep.subr.mxu0 0.0
        %785 = vmatpush1.msra.mxu0 0.0
        %786 = vmatprep.subr.mxu0 0.0
        %787 = vmatpush1.msra.mxu0 0.0
        %788 = vmatprep.subr.mxu0 0.0
        %789 = vmatpush1.msra.mxu0 0.0
        %790 = vmatprep.subr.mxu0 0.0
        %791 = vmatpush1.msra.mxu0 0.0
        %792 = vmatprep.mubr.f32.mxu0 0.0
        %793 = vmatmul.mubr.f32.gmra.mrb[0].mxu0 %v723
        %v794 = vpop.f32.mrb[0].mxu0
        %v795 = vadd.f32 %v727, %v794
        %v796 = vpop.f32.mrb[0].mxu0
        %797 = vdwg.mxu0
        %v798 = vmax.f32 %v795, 0.0
        %v799 = vlaneseq
        %v800 = vshrl.u32 %v799, 7
        %v801 = vsub.s32 5, %v800
        %v802 = vrot.slane %v336, %v801
        %803 = vmatprep.subr.mxu0 0.0
        %804 = vmatpush1.msra.mxu0 %v320
        %805 = vmatprep.subr.mxu0 0.0
        %806 = vmatpush1.msra.mxu0 %v321
        %807 = vmatprep.subr.mxu0 0.0
        %808 = vmatpush1.msra.mxu0 %v322
        %809 = vmatprep.subr.mxu0 0.0
        %810 = vmatpush1.msra.mxu0 %v323
        %811 = vmatprep.subr.mxu0 0.0
        %812 = vmatpush1.msra.mxu0 %v324
        %813 = vmatprep.subr.mxu0 0.0
        %814 = vmatpush1.msra.mxu0 %v325
        %815 = vmatprep.subr.mxu0 0.0
        %816 = vmatpush1.msra.mxu0 %v326
        %817 = vmatprep.subr.mxu0 0.0
        %818 = vmatpush1.msra.mxu0 %v327
        %819 = vmatprep.subr.mxu0 0.0
        %820 = vmatpush1.msra.mxu0 %v328
        %821 = vmatprep.subr.mxu0 0.0
        %822 = vmatpush1.msra.mxu0 %v329
        %823 = vmatprep.subr.mxu0 0.0
        %824 = vmatpush1.msra.mxu0 %v330
        %825 = vmatprep.subr.mxu0 0.0
        %826 = vmatpush1.msra.mxu0 %v331
        %827 = vmatprep.subr.mxu0 0.0
        %828 = vmatpush1.msra.mxu0 %v332
        %829 = vmatprep.subr.mxu0 0.0
        %830 = vmatpush1.msra.mxu0 %v333
        %831 = vmatprep.subr.mxu0 0.0
        %832 = vmatpush1.msra.mxu0 %v334
        %833 = vmatprep.subr.mxu0 0.0
        %834 = vmatpush1.msra.mxu0 %v335
        %835 = vmatprep.subr.mxu0 0.0
        %836 = vmatpush1.msra.mxu0 0.0
        %837 = vmatprep.subr.mxu0 0.0
        %838 = vmatpush1.msra.mxu0 0.0
        %839 = vmatprep.subr.mxu0 0.0
        %840 = vmatpush1.msra.mxu0 0.0
        %841 = vmatprep.subr.mxu0 0.0
        %842 = vmatpush1.msra.mxu0 0.0
        %843 = vmatprep.subr.mxu0 0.0
        %844 = vmatpush1.msra.mxu0 0.0
        %845 = vmatprep.subr.mxu0 0.0
        %846 = vmatpush1.msra.mxu0 0.0
        %847 = vmatprep.subr.mxu0 0.0
        %848 = vmatpush1.msra.mxu0 0.0
        %849 = vmatprep.subr.mxu0 0.0
        %850 = vmatpush1.msra.mxu0 0.0
        %851 = vmatprep.subr.mxu0 0.0
        %852 = vmatpush1.msra.mxu0 0.0
        %853 = vmatprep.subr.mxu0 0.0
        %854 = vmatpush1.msra.mxu0 0.0
        %855 = vmatprep.subr.mxu0 0.0
        %856 = vmatpush1.msra.mxu0 0.0
        %857 = vmatprep.subr.mxu0 0.0
        %858 = vmatpush1.msra.mxu0 0.0
        %859 = vmatprep.subr.mxu0 0.0
        %860 = vmatpush1.msra.mxu0 0.0
        %861 = vmatprep.subr.mxu0 0.0
        %862 = vmatpush1.msra.mxu0 0.0
        %863 = vmatprep.subr.mxu0 0.0
        %864 = vmatpush1.msra.mxu0 0.0
        %865 = vmatprep.subr.mxu0 0.0
        %866 = vmatpush1.msra.mxu0 0.0
        %867 = vmatprep.mubr.f32.mxu0 0.0
        %868 = vmatmul.mubr.f32.gmra.mrb[0].mxu0 %v798
        %v869 = vpop.f32.mrb[0].mxu0
        %v870 = vadd.f32 %v802, %v869
        %v871 = vpop.f32.mrb[0].mxu0
        %872 = vdwg.mxu0
        %v873 = vand.u32 2147483647, %v870
        %v874 = vsub.f32 0.0, %v873
        %v875 = vmul.f32 %v874, 1.442695
        %v876 = vpow.pop %v875
        %v877 = vadd.f32 %v876, 1.0
        %v878 = vlog2.pop %v877
        %v879 = vmul.f32 %v878, 0.6931472
        %v880 = vmul.f32 -0.5, %v876
        %v881 = vadd.f32 %v880, 1.0
        %v882 = vmul.f32 %v881, %v876
        %v883 = vand.u32 2147483647, %v876
        %vm884 = vcmp.lt.f32.partialorder %v883, 0.0004427343
        %v885 = vsel %vm884, %v882, %v879
        %v886 = vmax.f32 %v870, 0.0
        %v887 = vadd.f32 %v885, %v886
        %v888 = vadd.f32 %v887, 0.1
        %v889 = vlaneseq
        %v890 = vand.u32 %v889, 127
        %vm891 = vcmp.ge.s32.totalorder %v890, 2
        %vm892 = vcmp.lt.s32.totalorder %v890, 4
        %vm893 = vmand %vm891, %vm892
        %v894 = vsel %vm893, %v888, %v870
        %895 = vst [vmem:[%s243] sm:$0xff] %v894
        %s896 = sand.u32 %s143, 1
        %s897 = scalar_lea.sflag [#allocation4], %s896
        %s898 = sand.u32 %s143, 1
        %s899 = smul.addr %s898, 8
        %s900 = scalar_lea.vmem [#allocation5], %s899
        // Predicated region
        $region45: #{tpu_custom_call.1} parent=39 // pred_check
          %p901 = pneg %p153
        $region46: #{tpu_custom_call.1} parent=39 // pred_check_branch
          %903 = sbr.rel (%p901) target = $region48
        $region47: #{tpu_custom_call.1} parent=39 // pred_region
          %s905 = ssub.s32 128, 128
          %906 = vsyncadd %s897, %s905
          %s907 = smul.addr %s20, 128
          %s908 = scalar_lea.hbm %s5, %s907
          %s910 = sshll.u32 %s900, 4
          %s911 = int_to_ptr.vmem [resolvable:$true] %s910
          %913 = dma.vmem_to_hbm [thread:$0]  %s911, 128, %s908, %s897
        $region48: #{tpu_custom_call.1} parent=39 // pred_fallthru
          _
      $region40: #{tpu_custom_call.1} parent=5 // pred_fallthru
        _
      %p914 = scmp.le.s32.totalorder 2, %s15
      // Predicated region
      $region49: #{tpu_custom_call.1} parent=5 // pred_check
        %p915 = pneg %p914
      $region50: #{tpu_custom_call.1} parent=5 // pred_check_branch
        %917 = sbr.rel (%p915) target = $region52
      $region51: #{tpu_custom_call.1} parent=5 // pred_region
        %s918 = ssub.s32 %s15, 2
        // Predicated region
        $region53: #{tpu_custom_call.1} parent=51 // pred_check
          %p919 = pneg %p159
        $region54: #{tpu_custom_call.1} parent=51 // pred_check_branch
          %921 = sbr.rel (%p919) target = $region56
        $region55: #{tpu_custom_call.1} parent=51 // pred_region
          %s922 = sand.u32 %s144, 1
          %s923 = scalar_lea.sflag [#allocation4], %s922
          %s924 = sand.u32 %s144, 1
          %s925 = smul.addr %s924, 8
          %s926 = scalar_lea.vmem [#allocation5], %s925
          %927 = dma.done %s923, 128
        $region56: #{tpu_custom_call.1} parent=51 // pred_fallthru
          _
      $region52: #{tpu_custom_call.1} parent=5 // pred_fallthru
        _
    $region6: #{tpu_custom_call.1} parent=1 // loop_footer
      %s19 = sadd.s32 1, %s15
    $region7: #{tpu_custom_call.1} parent=1 // loop_footer_branch
      %14 = sbr.rel target = $region3
    $region8: #{tpu_custom_call.1} parent=1 // loop_exit
      _
    %928 = vsyncpa [#allocation3], 1
    %s929 = scalar_lea.sflag [#allocation3], 1
    %930 = vsyncpa %s929, 1
    %931 = vsyncpa [#allocation4], 1
    %s932 = scalar_lea.sflag [#allocation4], 1
    %933 = vsyncpa %s932, 1

</llo_original>
